<compile_context>
chip_gen: v5e
topology: v5e:2x2
jax: 0.10.0
libtpu: 0.0.40
codegen_flags: <defaults>
</compile_context>

<pallas_src>
import functools
import math

import jax
import jax.numpy as jnp
from jax import lax
from jax.experimental import pallas as pl
from jax.experimental.pallas import tpu as pltpu


def _cp(dims=None):
    # 32 MiB scoped VMEM: default on v6e/v7x, safely raises v5e's 16 MiB default for the
    # ~10 MB double-buffered weight tiles, leaves >=32 MiB headroom on v7x (64 MiB phys).
    return pltpu.CompilerParams(dimension_semantics=dims,
                                vmem_limit_bytes=32 * 1024 * 1024)


def _full(shape):
    # full-array block (allowed even when dims are not (8,128)-aligned)
    return pl.BlockSpec(tuple(shape), lambda i: (0,) * len(shape))


# --------------------------------------------------------------------------- #
# Generic fused Linear (+ optional ReLU) : y = x @ W^T + b   (W^T pre-stored)
# --------------------------------------------------------------------------- #
def _linear_bias_kernel(x_ref, w_ref, b_ref, o_ref, *, relu):
    y = jnp.dot(x_ref[...], w_ref[...], preferred_element_type=jnp.float32) + b_ref[...]
    if relu:
        y = jnp.maximum(y, 0.0)
    o_ref[...] = y


def _linear_nobias_kernel(x_ref, w_ref, o_ref, *, relu):
    y = jnp.dot(x_ref[...], w_ref[...], preferred_element_type=jnp.float32)
    if relu:
        y = jnp.maximum(y, 0.0)
    o_ref[...] = y


def pallas_linear(x, wt, b=None, relu=False):
    """x: [M, K], wt: pre-transposed weight [K, N], b: [1, N] or None -> [M, N]."""
    m, k = x.shape
    n = wt.shape[1]
    if b is None:
        return pl.pallas_call(
            functools.partial(_linear_nobias_kernel, relu=relu),
            out_shape=jax.ShapeDtypeStruct((m, n), jnp.float32),
            grid=(1,),
            in_specs=[_full((m, k)), _full((k, n))],
            out_specs=_full((m, n)),
            compiler_params=_cp(),
        )(x, wt)
    return pl.pallas_call(
        functools.partial(_linear_bias_kernel, relu=relu),
        out_shape=jax.ShapeDtypeStruct((m, n), jnp.float32),
        grid=(1,),
        in_specs=[_full((m, k)), _full((k, n)), _full((1, n))],
        out_specs=_full((m, n)),
        compiler_params=_cp(),
    )(x, wt, b)


# --------------------------------------------------------------------------- #
# TransformerConv (PyG semantics) + fused skip-add + ReLU epilogue.
# adj[i, j] == 1 iff edge (src=j -> dst=i); softmax over sources j.
# Grid runs over heads ("parallel").
# --------------------------------------------------------------------------- #
def _graph_attn_kernel(q_ref, k_ref, v_ref, s_ref, adj_ref, o_ref, *, scale):
    q = q_ref[0]                                  # [n, d]
    k = k_ref[0]
    v = v_ref[0]
    skip = s_ref[0]
    mask = adj_ref[...] > 0.0
    logits = jnp.dot(q, k.T, preferred_element_type=jnp.float32) * scale
    logits = jnp.where(mask, logits, -1e30)
    m = jnp.max(logits, axis=-1, keepdims=True)
    p = jnp.where(mask, jnp.exp(logits - m), 0.0)
    denom = jnp.sum(p, axis=-1, keepdims=True)
    p = p * pl.reciprocal(jnp.where(denom == 0.0, 1.0, denom), approx=True)
    agg = jnp.dot(p, v, preferred_element_type=jnp.float32)
    o_ref[0] = jnp.maximum(agg + skip, 0.0)       # fused skip + ReLU epilogue


def transformer_conv_relu(x, adj, p, heads, out_ch):
    """PyG TransformerConv (concat heads, root_weight) followed by ReLU."""
    n = x.shape[0]
    # single fused projection: columns = [q | k | v | skip], each head-major
    proj = pallas_linear(x, p["wqkvs_t"], p["bqkvs"])            # [n, 4*H*D]
    proj = proj.reshape(n, 4, heads, out_ch).transpose(1, 2, 0, 3)  # [4, H, n, D]
    qh, kh, vh, sh = proj[0], proj[1], proj[2], proj[3]
    spec_h = pl.BlockSpec((1, n, out_ch), lambda h: (h, 0, 0))
    out = pl.pallas_call(
        functools.partial(_graph_attn_kernel, scale=1.0 / math.sqrt(out_ch)),
        out_shape=jax.ShapeDtypeStruct((heads, n, out_ch), jnp.float32),
        grid=(heads,),
        in_specs=[spec_h, spec_h, spec_h, spec_h,
                  pl.BlockSpec((n, n), lambda h: (0, 0))],
        out_specs=spec_h,
        compiler_params=_cp(dims=("parallel",)),
    )(qh, kh, vh, sh, adj)
    return out.transpose(1, 0, 2).reshape(n, heads * out_ch)


# --------------------------------------------------------------------------- #
# global max / mean pooling (gmp / gap) + fc_g1 (+ReLU) + fc_g2, fully fused.
# cat([gmp, gap]) @ W1 is computed as gmp @ W1a + gap @ W1b (split weight).
# --------------------------------------------------------------------------- #
def _pool_mlp_kernel(x_ref, m_ref, w1a_ref, w1b_ref, b1_ref, w2_ref, b2_ref, o_ref):
    x = x_ref[...]                                       # [N, F]
    m = m_ref[...]                                       # [B, N] one-hot membership
    bsz, n = m.shape
    f = x.shape[1]
    counts = jnp.sum(m, axis=-1, keepdims=True)
    counts = jnp.where(counts == 0.0, 1.0, counts)       # guard empty graph slot
    mean = jnp.dot(m, x, preferred_element_type=jnp.float32) / counts        # gap
    mask3 = jnp.broadcast_to((m > 0.0)[:, :, None], (bsz, n, f))
    x3 = jnp.broadcast_to(x[None, :, :], (bsz, n, f))
    mx = jnp.max(jnp.where(mask3, x3, jnp.float32(-3.0e38)), axis=1)          # gmp
    h = jnp.dot(mx, w1a_ref[...], preferred_element_type=jnp.float32)
    h = h + jnp.dot(mean, w1b_ref[...], preferred_element_type=jnp.float32)
    h = jnp.maximum(h + b1_ref[...], 0.0)                # fc_g1 + ReLU (dropout = id)
    o_ref[...] = jnp.dot(h, w2_ref[...], preferred_element_type=jnp.float32) + b2_ref[...]


def pool_mlp(x, onehot, p):
    b = onehot.shape[0]
    d_out = p["w2_t"].shape[1]
    args = (x, onehot, p["w1a_t"], p["w1b_t"], p["b1"], p["w2_t"], p["b2"])
    return pl.pallas_call(
        _pool_mlp_kernel,
        out_shape=jax.ShapeDtypeStruct((b, d_out), jnp.float32),
        grid=(1,),
        in_specs=[_full(a.shape) for a in args],
        out_specs=_full((b, d_out)),
        compiler_params=_cp(),
    )(*args)


# --------------------------------------------------------------------------- #
# Bidirectional LSTM layer: both directions fused into one kernel, recurrences
# interleaved per step; input gates for both directions precomputed by one
# fused linear.  Gate order (torch): i, f, g, o.
# --------------------------------------------------------------------------- #
def _bilstm_layer_kernel(xg_ref, whf_ref, whb_ref, of_ref, ob_ref, hf, cf, hb, cb):
    s = xg_ref.shape[0]
    hid = whf_ref.shape[0]
    hf[...] = jnp.zeros_like(hf)
    cf[...] = jnp.zeros_like(cf)
    hb[...] = jnp.zeros_like(hb)
    cb[...] = jnp.zeros_like(cb)

    @pl.loop(0, s)
    def _(t):
        tb = (s - 1) - t
        # two independent recurrences in one step -> hides tiny-matmul / EUP latency
        gf = xg_ref[t][:, :4 * hid] + jnp.dot(hf[...], whf_ref[...],
                                              preferred_element_type=jnp.float32)
        gb = xg_ref[tb][:, 4 * hid:] + jnp.dot(hb[...], whb_ref[...],
                                               preferred_element_type=jnp.float32)
        i_f = jax.nn.sigmoid(gf[:, 0 * hid:1 * hid])
        f_f = jax.nn.sigmoid(gf[:, 1 * hid:2 * hid])
        g_f = jnp.tanh(gf[:, 2 * hid:3 * hid])
        o_f = jax.nn.sigmoid(gf[:, 3 * hid:4 * hid])
        i_b = jax.nn.sigmoid(gb[:, 0 * hid:1 * hid])
        f_b = jax.nn.sigmoid(gb[:, 1 * hid:2 * hid])
        g_b = jnp.tanh(gb[:, 2 * hid:3 * hid])
        o_b = jax.nn.sigmoid(gb[:, 3 * hid:4 * hid])
        cfn = f_f * cf[...] + i_f * g_f
        hfn = o_f * jnp.tanh(cfn)
        cbn = f_b * cb[...] + i_b * g_b
        hbn = o_b * jnp.tanh(cbn)
        cf[...] = cfn
        hf[...] = hfn
        cb[...] = cbn
        hb[...] = hbn
        of_ref[t] = hfn
        ob_ref[tb] = hbn


def bilstm_layer(x, lp):
    s, bp, in_dim = x.shape
    hid = lp["whh_f_t"].shape[0]
    # one fused linear for BOTH directions' input gates: [S*B, 8*hid]
    xg = pallas_linear(x.reshape(s * bp, in_dim), lp["wih_t"], lp["bih"])
    xg = xg.reshape(s, bp, 8 * hid)
    args = (xg, lp["whh_f_t"], lp["whh_b_t"])
    of, ob = pl.pallas_call(
        _bilstm_layer_kernel,
        out_shape=(jax.ShapeDtypeStruct((s, bp, hid), jnp.float32),
                   jax.ShapeDtypeStruct((s, bp, hid), jnp.float32)),
        grid=(1,),
        in_specs=[_full(a.shape) for a in args],
        out_specs=(_full((s, bp, hid)), _full((s, bp, hid))),
        scratch_shapes=[pltpu.VMEM((bp, hid), jnp.float32) for _ in range(4)],
        compiler_params=_cp(),
    )(*args)
    return jnp.concatenate([of, ob], axis=-1)


def bilstm(x, layers):
    out = x
    for lp in layers:
        out = bilstm_layer(out, lp)     # inter-layer dropout is identity in eval mode
    return out


# --------------------------------------------------------------------------- #
# Protein head: fused (W_Q|W_K|W_V) projection + self-attention (sum over seq)
# + LayerNorm + fc.  Grid over the batch dim ("parallel").
# --------------------------------------------------------------------------- #
def _protein_head_kernel(x_ref, wqkv_ref, g_ref, bln_ref, wfc_ref, bfc_ref, o_ref, *, d):
    xb = x_ref[...]                                                        # [L, d]
    qkv = jnp.dot(xb, wqkv_ref[...], preferred_element_type=jnp.float32)   # [L, 3d]
    q = qkv[:, 0 * d:1 * d]
    k = qkv[:, 1 * d:2 * d]
    v = qkv[:, 2 * d:3 * d]
    logits = jnp.dot(q, k.T, preferred_element_type=jnp.float32) * (1.0 / math.sqrt(d))
    logits = logits - jnp.max(logits, axis=-1, keepdims=True)
    p = jnp.exp(logits)
    p = p * pl.reciprocal(jnp.sum(p, axis=-1, keepdims=True), approx=True)
    ctx = jnp.dot(p, v, preferred_element_type=jnp.float32)                # [L, d]
    attn = jnp.sum(ctx, axis=0, keepdims=True)                             # context.sum(1)
    mu = jnp.mean(attn, axis=-1, keepdims=True)
    var = jnp.mean(jnp.square(attn - mu), axis=-1, keepdims=True)
    ln = (attn - mu) * lax.rsqrt(var + 1e-5) * g_ref[...] + bln_ref[...]
    o_ref[0] = jnp.dot(ln, wfc_ref[...], preferred_element_type=jnp.float32) + bfc_ref[...]


def protein_head(output_xt, p):
    s, l, d = output_xt.shape
    flat = output_xt.reshape(s * l, d)
    out = pl.pallas_call(
        functools.partial(_protein_head_kernel, d=d),
        out_shape=jax.ShapeDtypeStruct((s, 1, d), jnp.float32),
        grid=(s,),
        in_specs=[pl.BlockSpec((l, d), lambda b: (b, 0)),
                  pl.BlockSpec((d, 3 * d), lambda b: (0, 0)),
                  pl.BlockSpec((1, d), lambda b: (0, 0)),
                  pl.BlockSpec((1, d), lambda b: (0, 0)),
                  pl.BlockSpec((d, d), lambda b: (0, 0)),
                  pl.BlockSpec((1, d), lambda b: (0, 0))],
        out_specs=pl.BlockSpec((1, 1, d), lambda b: (b, 0, 0)),
        compiler_params=_cp(dims=("parallel",)),
    )(flat, p["wqkv_t"], p["ln_g"], p["ln_b"], p["wfc_t"], p["bfc"])
    return out.reshape(s, d)


# --------------------------------------------------------------------------- #
# Cross-modal similarity: l_att_proj + v_att_proj + v_att @ l_att^T + topk(k=1)
# --------------------------------------------------------------------------- #
def _cross_sim_kernel(x_ref, xt_ref, wl_ref, bl_ref, wv_ref, bv_ref, kg_ref):
    l_att = jnp.dot(x_ref[...], wl_ref[...], preferred_element_type=jnp.float32) + bl_ref[...]
    v_att = jnp.dot(xt_ref[...], wv_ref[...], preferred_element_type=jnp.float32) + bv_ref[...]
    sim = jnp.dot(v_att, l_att.T, preferred_element_type=jnp.float32)     # [B, B]
    kg_ref[...] = jnp.max(sim, axis=-1, keepdims=True)                    # topk(k=1).values


def cross_sim(x, xt, p):
    b = x.shape[0]
    args = (x, xt, p["wl_t"], p["bl"], p["wv_t"], p["bv"])
    kg = pl.pallas_call(
        _cross_sim_kernel,
        out_shape=jax.ShapeDtypeStruct((b, 1), jnp.float32),
        grid=(1,),
        in_specs=[_full(a.shape) for a in args],
        out_specs=_full((b, 1)),
        compiler_params=_cp(),
    )(*args)
    return kg[:, 0]


# --------------------------------------------------------------------------- #
# Tail: head = xt*hav ; lin300 (2-layer MLP) ; xt_sum = xt + xt_hat ;
#       fc1(cat(x, xt_sum)) -> ReLU -> fc2 -> ReLU -> out.   All in one kernel.
# cat(x, xt_sum) @ Wfc1^T is computed via the split weight (wf1x, wf1t).
# --------------------------------------------------------------------------- #
def _tail_kernel(x_ref, xt_ref, hav_ref,
                 w3a_ref, b3a_ref, w3b_ref, b3b_ref,
                 wf1x_ref, wf1t_ref, bf1_ref,
                 wf2_ref, bf2_ref, wo_ref, bo_ref, o_ref):
    xt = xt_ref[...]
    head = xt * hav_ref[...]
    h = jnp.maximum(jnp.dot(head, w3a_ref[...], preferred_element_type=jnp.float32)
                    + b3a_ref[...], 0.0)
    xt_hat = jnp.dot(h, w3b_ref[...], preferred_element_type=jnp.float32) + b3b_ref[...]
    xt_sum = xt + xt_hat
    h1 = jnp.dot(x_ref[...], wf1x_ref[...], preferred_element_type=jnp.float32)
    h1 = h1 + jnp.dot(xt_sum, wf1t_ref[...], preferred_element_type=jnp.float32)
    h1 = jnp.maximum(h1 + bf1_ref[...], 0.0)                              # fc1 + ReLU
    h2 = jnp.maximum(jnp.dot(h1, wf2_ref[...], preferred_element_type=jnp.float32)
                     + bf2_ref[...], 0.0)                                 # fc2 + ReLU
    o_ref[...] = jnp.dot(h2, wo_ref[...], preferred_element_type=jnp.float32) + bo_ref[...]


def tail_mlp(x, xt, hav, p):
    b = x.shape[0]
    n_out = p["wo_t"].shape[1]
    args = (x, xt, hav, p["w3a_t"], p["b3a"], p["w3b_t"], p["b3b"],
            p["wf1x_t"], p["wf1t_t"], p["bf1"], p["wf2_t"], p["bf2"],
            p["wo_t"], p["bo"])
    return pl.pallas_call(
        _tail_kernel,
        out_shape=jax.ShapeDtypeStruct((b, n_out), jnp.float32),
        grid=(1,),
        in_specs=[_full(a.shape) for a in args],
        out_specs=_full((b, n_out)),
        compiler_params=_cp(),
    )(*args)


# --------------------------------------------------------------------------- #
# Parameter initialization (deterministic, torch-like uniform(-1/sqrt(fan_in), .))
# Weights stored pre-transposed ([in, out]); biases stored [1, out].
# --------------------------------------------------------------------------- #
def _uniform(key, shape, bound):
    return jax.random.uniform(key, shape, jnp.float32, minval=-bound, maxval=bound)


def _linear_wt(key, in_dim, out_dim, bias=True):
    k1, k2 = jax.random.split(key)
    bound = 1.0 / math.sqrt(in_dim)
    wt = _uniform(k1, (in_dim, out_dim), bound)
    b = _uniform(k2, (1, out_dim), bound) if bias else None
    return wt, b


def init_params(key):
    ks = iter(jax.random.split(key, 64))
    nfd = 78
    p = {}

    def tconv(in_dim, out_dim, heads):
        wts, bs = [], []
        for _ in range(4):                         # q, k, v, skip (fused along out dim)
            wt, b = _linear_wt(next(ks), in_dim, heads * out_dim)
            wts.append(wt)
            bs.append(b)
        return {"wqkvs_t": jnp.concatenate(wts, axis=1),
                "bqkvs": jnp.concatenate(bs, axis=1)}

    p["conv1"] = tconv(nfd, nfd, 10)
    p["conv2"] = tconv(nfd * 10, nfd * 10, 1)

    # fc_g1 (1560->1500) + fc_g2 (1500->128); hidden padded 1500->1536 with zeros (exact)
    w1t, b1 = _linear_wt(next(ks), 2 * nfd * 10, 1500)
    w2t, b2 = _linear_wt(next(ks), 1500, 128)
    w1t = jnp.zeros((2 * nfd * 10, 1536), jnp.float32).at[:, :1500].set(w1t)
    b1 = jnp.zeros((1, 1536), jnp.float32).at[:, :1500].set(b1)
    w2t = jnp.zeros((1536, 128), jnp.float32).at[:1500, :].set(w2t)
    p["fcg"] = {"w1a_t": w1t[:nfd * 10], "w1b_t": w1t[nfd * 10:],
                "b1": b1, "w2_t": w2t, "b2": b2}

    # protein branch
    p["emb"] = jax.random.normal(next(ks), (26, 128), jnp.float32)   # num_features_xt + 1
    wq, _ = _linear_wt(next(ks), 128, 128, bias=False)
    wk, _ = _linear_wt(next(ks), 128, 128, bias=False)
    wv, _ = _linear_wt(next(ks), 128, 128, bias=False)
    p["wqkv_t"] = jnp.concatenate([wq, wk, wv], axis=1)              # [128, 384]
    p["ln_g"] = jnp.ones((1, 128), jnp.float32)
    p["ln_b"] = jnp.zeros((1, 128), jnp.float32)
    p["wfc_t"], p["bfc"] = _linear_wt(next(ks), 128, 128)

    hid = 64
    layers = []
    for _layer in range(2):
        in_dim = 128                   # embed_dim for layer 0, 2*hid = 128 for layer 1
        bound = 1.0 / math.sqrt(hid)
        dirs = {}
        for dname in ("f", "b"):
            w_ih = _uniform(next(ks), (4 * hid, in_dim), bound)
            w_hh = _uniform(next(ks), (4 * hid, hid), bound)
            b_ih = _uniform(next(ks), (4 * hid,), bound)
            b_hh = _uniform(next(ks), (4 * hid,), bound)
            dirs[dname] = (w_ih, w_hh, b_ih, b_hh)
        wih_t = jnp.concatenate([dirs["f"][0].T, dirs["b"][0].T], axis=1)   # [in, 8*hid]
        bih = jnp.concatenate([dirs["f"][2] + dirs["f"][3],
                               dirs["b"][2] + dirs["b"][3]])[None, :]       # [1, 8*hid]
        layers.append({"wih_t": wih_t, "bih": bih,
                       "whh_f_t": dirs["f"][1].T, "whh_b_t": dirs["b"][1].T})
    p["bilstm"] = layers

    # cross-modal + output head
    cross = {}
    cross["wl_t"], cross["bl"] = _linear_wt(next(ks), 128, 1024)     # l_att_proj
    cross["wv_t"], cross["bv"] = _linear_wt(next(ks), 128, 1024)     # v_att_proj
    p["cross"] = cross
    tail = {}
    tail["w3a_t"], tail["b3a"] = _linear_wt(next(ks), 128, 1024)     # linear_300[0]
    tail["w3b_t"], tail["b3b"] = _linear_wt(next(ks), 1024, 128)     # linear_300[2]
    wf1, bf1 = _linear_wt(next(ks), 256, 1024)                       # fc1 (split for concat)
    tail["wf1x_t"] = wf1[:128]
    tail["wf1t_t"] = wf1[128:]
    tail["bf1"] = bf1
    tail["wf2_t"], tail["bf2"] = _linear_wt(next(ks), 1024, 512)     # fc2
    tail["wo_t"], tail["bo"] = _linear_wt(next(ks), 512, 2)          # out
    p["tail"] = tail
    return p


# --------------------------------------------------------------------------- #
# Forward pass (mirrors GATA.forward; dropout = identity in eval mode)
# --------------------------------------------------------------------------- #
def gata_forward(p, x_nodes, adj, batch_onehot, target, gumbel_key):
    nfd = 78
    # ---- graph (drug) branch ----
    x = transformer_conv_relu(x_nodes, adj, p["conv1"], heads=10, out_ch=nfd)
    x = transformer_conv_relu(x, adj, p["conv2"], heads=1, out_ch=nfd * 10)
    x = pool_mlp(x, batch_onehot, p["fcg"])                # cat([gmp,gap]) -> fc_g1 -> fc_g2

    # ---- protein branch (seq-first convention of the non-batch_first nn.LSTM) ----
    embedded = jnp.take(p["emb"], target, axis=0)          # [B, L, 128]
    output_xt = bilstm(embedded, p["bilstm"])              # [B, L, 128]
    xt = protein_head(output_xt, p)                        # fused QKV+attn+LN+fc -> [B, 128]

    # ---- cross-modal hard attention ----
    kg_output = cross_sim(x, xt, p["cross"])               # topk(k=1).values -> [B]
    # TODO(synk): torch gumbel_softmax noise is stochastic; a fixed JAX key is used here
    gumbel = jax.random.gumbel(gumbel_key, kg_output.shape, jnp.float32)
    hard_attention_value = jax.nn.softmax(kg_output + gumbel, axis=-1)
    out = tail_mlp(x, xt, hard_attention_value[:, None], p["tail"])
    return out, hard_attention_value


if __name__ == "__main__":
    key = jax.random.PRNGKey(0)
    kp, kx, kt, kg = jax.random.split(key, 4)
    params = init_params(kp)

    # graph: 2 graphs of 8 nodes each, 78 features per node
    n_nodes, n_graphs, nfd = 16, 2, 78
    x_nodes = jax.random.normal(kx, (n_nodes, nfd), jnp.float32)
    # bidirectional ring per graph -> every node has incoming edges
    src, dst = [], []
    for g in range(n_graphs):
        base = g * 8
        for i in range(8):
            a, b = base + i, base + (i + 1) % 8
            src += [a, b]
            dst += [b, a]
    edge_index = jnp.array([src, dst], dtype=jnp.int32)               # [2, E]
    adj = jnp.zeros((n_nodes, n_nodes), jnp.float32).at[
        edge_index[1], edge_index[0]].set(1.0)                        # adj[dst, src] = 1
    batch = jnp.repeat(jnp.arange(n_graphs, dtype=jnp.int32), 8)
    batch_onehot = (batch[None, :] == jnp.arange(n_graphs)[:, None]).astype(jnp.float32)

    # protein targets: [B=2, L=8] integer tokens in [0, 25]
    target = jax.random.randint(kt, (n_graphs, 8), 0, 26, dtype=jnp.int32)

    out, hard_attn = gata_forward(params, x_nodes, adj, batch_onehot, target, kg)
    jax.block_until_ready((out, hard_attn))
    assert out.shape == (n_graphs, 2), out.shape
    assert hard_attn.shape == (n_graphs,), hard_attn.shape
    assert bool(jnp.all(jnp.isfinite(out))) and bool(jnp.all(jnp.isfinite(hard_attn)))
    print("KERNEL_OK")
</pallas_src>

<mosaic_0001>
module attributes {stable_mosaic.version = 11 : i64} {
  func.func @_linear_bias_kernel(%arg0: i32, %arg1: memref<16x78xf32, #tpu.memory_space<vmem>>, %arg2: memref<78x3120xf32, #tpu.memory_space<vmem>>, %arg3: memref<1x3120xf32, #tpu.memory_space<vmem>>, %arg4: memref<16x3120xf32, #tpu.memory_space<vmem>>) attributes {dimension_semantics = [#tpu.dimension_semantics<arbitrary>], iteration_bounds = array<i64: 1>, scalar_prefetch = 0 : i64, scratch_operands = 0 : i64, tpu.core_type = #tpu.core_type<tc>, window_params = [{pipeline_mode = #tpu.pipeline_mode<synchronous>, transform_indices = @transform_0, window_bounds = array<i64: 16, 78>}, {pipeline_mode = #tpu.pipeline_mode<synchronous>, transform_indices = @transform_1, window_bounds = array<i64: 78, 3120>}, {pipeline_mode = #tpu.pipeline_mode<synchronous>, transform_indices = @transform_2, window_bounds = array<i64: 1, 3120>}, {pipeline_mode = #tpu.pipeline_mode<synchronous>, transform_indices = @transform_3, window_bounds = array<i64: 16, 3120>}]} {
    %c0 = arith.constant 0 : index
    %c0_0 = arith.constant 0 : index
    %0 = vector.load %arg1[%c0, %c0_0] : memref<16x78xf32, #tpu.memory_space<vmem>>, vector<16x78xf32>
    %c0_1 = arith.constant 0 : index
    %c0_2 = arith.constant 0 : index
    %1 = vector.load %arg2[%c0_1, %c0_2] : memref<78x3120xf32, #tpu.memory_space<vmem>>, vector<78x3120xf32>
    %cst = arith.constant dense<0.000000e+00> : vector<16x3120xf32>
    %2 = tpu.matmul %0, %1, %cst {dimension_numbers = #tpu.dot_dimension_numbers<[1], [0], [0], [1], [0, 0, 1, 1], [], []>} : vector<16x78xf32>, vector<78x3120xf32>, vector<16x3120xf32> -> vector<16x3120xf32>
    %c0_3 = arith.constant 0 : index
    %c0_4 = arith.constant 0 : index
    %3 = vector.load %arg3[%c0_3, %c0_4] : memref<1x3120xf32, #tpu.memory_space<vmem>>, vector<1x3120xf32>
    %4 = vector.broadcast %3 : vector<1x3120xf32> to vector<16x3120xf32>
    %5 = arith.addf %2, %4 : vector<16x3120xf32>
    %c0_5 = arith.constant 0 : index
    %c0_6 = arith.constant 0 : index
    %6 = vector.load %arg4[%c0_5, %c0_6] : memref<16x3120xf32, #tpu.memory_space<vmem>>, vector<16x3120xf32>
    tpu.vector_store %arg4[%c0_5, %c0_6], %5 {strides = array<i32>} : memref<16x3120xf32, #tpu.memory_space<vmem>>, vector<16x3120xf32>,
    return
  }
  func.func @transform_0(%arg0: i32) -> (i32, i32) {
    %c0_i32 = arith.constant 0 : i32
    %c0_i32_0 = arith.constant 0 : i32
    %c0_i32_1 = arith.constant 0 : i32
    return %c0_i32, %c0_i32_0 : i32, i32
  }
  func.func @transform_1(%arg0: i32) -> (i32, i32) {
    %c0_i32 = arith.constant 0 : i32
    %c0_i32_0 = arith.constant 0 : i32
    %c0_i32_1 = arith.constant 0 : i32
    return %c0_i32, %c0_i32_0 : i32, i32
  }
  func.func @transform_2(%arg0: i32) -> (i32, i32) {
    %c0_i32 = arith.constant 0 : i32
    %c0_i32_0 = arith.constant 0 : i32
    %c0_i32_1 = arith.constant 0 : i32
    return %c0_i32, %c0_i32_0 : i32, i32
  }
  func.func @transform_3(%arg0: i32) -> (i32, i32) {
    %c0_i32 = arith.constant 0 : i32
    %c0_i32_0 = arith.constant 0 : i32
    %c0_i32_1 = arith.constant 0 : i32
    return %c0_i32, %c0_i32_0 : i32, i32
  }
}

</mosaic_0001>

<llo_original>
// kernel: tpu_custom_call.1
$region0: #{tpu_custom_call.1}
  #allocation0 [shape = 'u32[]', space=smem, size = 0x4, offset = 0x4, fixed_abs, tag = 'smem constant byte address 0x4 - core index']
  #allocation1 [shape = 'u32[72,128]{1,0:T(1,128)}', space=vmem, size = 0x9000, scoped, tag = 'internal scratch']
  %s0 = inlined_call_operand.hbm [shape: f32[16,78], index: 0, kind: input, shape index: {}]
  %s1 = inlined_call_operand.hbm [shape: f32[78,3120], index: 1, kind: input, shape index: {}]
  %s2 = inlined_call_operand.hbm [shape: f32[1,3120], index: 2, kind: input, shape index: {}]
  %s3 = inlined_call_operand.hbm [shape: f32[16,3120], index: 3, kind: output, shape index: {}]
  %s4 = sld [smem:[#allocation0]]
  $region34: #{tpu_custom_call.1} parent=0
    _
  %s6 = ssub.s32 1, %s4
  %s7 = scalar_select 0, %s6, %s4
  $region1: #{tpu_custom_call.1} parent=0
    #allocation2 [shape = 'u8[8192]{0}', space=vmem, size = 0x2000, scoped, tag = 'input window, operand 0, single buffered']
    #allocation3 [shape = 's32[1]{0}', space=sflag, size = 0x4, scoped, tag = 'scoped memory for tpu_custom_call.1']
    #allocation4 [shape = 's32[1]{0}', space=sflag, size = 0x4, scoped, tag = 'scoped memory for tpu_custom_call.1']
    #allocation5 [shape = 'u8[1024000]{0}', space=vmem, size = 0xfa000, scoped, tag = 'input window, operand 1, single buffered']
    #allocation6 [shape = 's32[1]{0}', space=sflag, size = 0x4, scoped, tag = 'scoped memory for tpu_custom_call.1']
    #allocation7 [shape = 'u8[12800]{0}', space=vmem, size = 0x3400, scoped, tag = 'input window, operand 2, single buffered']
    #allocation8 [shape = 'u8[204800]{0}', space=vmem, size = 0x32000, scoped, tag = 'output window, operand 0, single buffered']
    %8 = vsyncpa [#allocation3], 0
    %9 = vsyncpa [#allocation6], 0
    %10 = vsyncpa [#allocation4], 0
    // Predicated region
    $region2: #{tpu_custom_call.1} parent=1 // pred_check
      _
    $region3: #{tpu_custom_call.1} parent=1 // pred_check_branch
      %12 = sbr.rel (0) target = $region5
    $region4: #{tpu_custom_call.1} parent=1 // pred_region
      %14 = vsyncadd [#allocation3], 0
      %s15 = sshll.u32 %s0, 4
      %s16 = int_to_ptr.hbm [resolvable:$true] %s15
      %s17 = sshll.u32 [#allocation2], 4
      %s18 = int_to_ptr.vmem [resolvable:$true] %s17
      %23 = dma.hbm_to_vmem [thread:$0]  %s16, 256, %s18, [#allocation3], 128, 128, 8
    $region5: #{tpu_custom_call.1} parent=1 // pred_fallthru
      _
    // Predicated region
    $region6: #{tpu_custom_call.1} parent=1 // pred_check
      _
    $region7: #{tpu_custom_call.1} parent=1 // pred_check_branch
      %25 = sbr.rel (0) target = $region9
    $region8: #{tpu_custom_call.1} parent=1 // pred_region
      %27 = vsyncadd [#allocation6], 0
      %s28 = sshll.u32 %s1, 4
      %s29 = int_to_ptr.hbm [resolvable:$true] %s28
      %s30 = sshll.u32 [#allocation5], 4
      %s31 = int_to_ptr.vmem [resolvable:$true] %s30
      %36 = dma.hbm_to_vmem [thread:$0]  %s29, 32000, %s31, [#allocation6], 3200, 3200, 200
    $region9: #{tpu_custom_call.1} parent=1 // pred_fallthru
      _
    // Predicated region
    $region10: #{tpu_custom_call.1} parent=1 // pred_check
      _
    $region11: #{tpu_custom_call.1} parent=1 // pred_check_branch
      %38 = sbr.rel (0) target = $region13
    $region12: #{tpu_custom_call.1} parent=1 // pred_region
      %40 = vsyncadd [#allocation6], 0
      %s42 = sshll.u32 %s2, 4
      %s43 = int_to_ptr.hbm [resolvable:$true] %s42
      %s44 = sshll.u32 [#allocation7], 4
      %s45 = int_to_ptr.vmem [resolvable:$true] %s44
      %47 = dma.hbm_to_vmem [thread:$0]  %s43, 400, %s45, [#allocation6]
    $region13: #{tpu_custom_call.1} parent=1 // pred_fallthru
      _
    // Predicated region
    $region14: #{tpu_custom_call.1} parent=1 // pred_check
      _
    $region15: #{tpu_custom_call.1} parent=1 // pred_check_branch
      %49 = sbr.rel (0) target = $region17
    $region16: #{tpu_custom_call.1} parent=1 // pred_region
      %51 = dma.done [#allocation3], 256
    $region17: #{tpu_custom_call.1} parent=1 // pred_fallthru
      _
    // Predicated region
    $region18: #{tpu_custom_call.1} parent=1 // pred_check
      _
    $region19: #{tpu_custom_call.1} parent=1 // pred_check_branch
      %53 = sbr.rel (0) target = $region21
    $region20: #{tpu_custom_call.1} parent=1 // pred_region
      %55 = dma.done [#allocation6], 32000
    $region21: #{tpu_custom_call.1} parent=1 // pred_fallthru
      _
    // Predicated region
    $region22: #{tpu_custom_call.1} parent=1 // pred_check
      _
    $region23: #{tpu_custom_call.1} parent=1 // pred_check_branch
      %57 = sbr.rel (0) target = $region25
    $region24: #{tpu_custom_call.1} parent=1 // pred_region
      %59 = dma.done [#allocation6], 400
    $region25: #{tpu_custom_call.1} parent=1 // pred_fallthru
      _
    %v60 = vld [vmem:[#allocation2] sm:$0xff]
    %v61 = vld [vmem:[#allocation2 + $0x8] sm:$0xff]
    %v62 = vld [vmem:[#allocation5] sm:$0xff]
    %v63 = vld [vmem:[#allocation5 + $0x8] sm:$0xff]
    %v64 = vld [vmem:[#allocation5 + $0x10] sm:$0xff]
    %v65 = vld [vmem:[#allocation5 + $0x18] sm:$0xff]
    %v66 = vld [vmem:[#allocation5 + $0x20] sm:$0xff]
    %v67 = vld [vmem:[#allocation5 + $0x28] sm:$0xff]
    %v68 = vld [vmem:[#allocation5 + $0x30] sm:$0xff]
    %v69 = vld [vmem:[#allocation5 + $0x38] sm:$0xff]
    %v70 = vld [vmem:[#allocation5 + $0x40] sm:$0xff]
    %v71 = vld [vmem:[#allocation5 + $0x48] sm:$0xff]
    %v72 = vld [vmem:[#allocation5 + $0x50] sm:$0xff]
    %v73 = vld [vmem:[#allocation5 + $0x58] sm:$0xff]
    %v74 = vld [vmem:[#allocation5 + $0x60] sm:$0xff]
    %v75 = vld [vmem:[#allocation5 + $0x68] sm:$0xff]
    %v76 = vld [vmem:[#allocation5 + $0x70] sm:$0xff]
    %v77 = vld [vmem:[#allocation5 + $0x78] sm:$0xff]
    %v78 = vld [vmem:[#allocation5 + $0x80] sm:$0xff]
    %v79 = vld [vmem:[#allocation5 + $0x88] sm:$0xff]
    %v80 = vld [vmem:[#allocation5 + $0x90] sm:$0xff]
    %v81 = vld [vmem:[#allocation5 + $0x98] sm:$0xff]
    %v82 = vld [vmem:[#allocation5 + $0xa0] sm:$0xff]
    %v83 = vld [vmem:[#allocation5 + $0xa8] sm:$0xff]
    %v84 = vld [vmem:[#allocation5 + $0xb0] sm:$0xff]
    %v85 = vld [vmem:[#allocation5 + $0xb8] sm:$0xff]
    %v86 = vld [vmem:[#allocation5 + $0xc0] sm:$0xff]
    %v87 = vld [vmem:[#allocation5 + $0xc8] sm:$0xff]
    %v88 = vld [vmem:[#allocation5 + $0xd0] sm:$0xff]
    %v89 = vld [vmem:[#allocation5 + $0xd8] sm:$0xff]
    %v90 = vld [vmem:[#allocation5 + $0xe0] sm:$0xff]
    %v91 = vld [vmem:[#allocation5 + $0xe8] sm:$0xff]
    %v92 = vld [vmem:[#allocation5 + $0xf0] sm:$0xff]
    %v93 = vld [vmem:[#allocation5 + $0xf8] sm:$0xff]
    %v94 = vld [vmem:[#allocation5 + $0x100] sm:$0xff]
    %v95 = vld [vmem:[#allocation5 + $0x108] sm:$0xff]
    %v96 = vld [vmem:[#allocation5 + $0x110] sm:$0xff]
    %v97 = vld [vmem:[#allocation5 + $0x118] sm:$0xff]
    %v98 = vld [vmem:[#allocation5 + $0x120] sm:$0xff]
    %v99 = vld [vmem:[#allocation5 + $0x128] sm:$0xff]
    %v100 = vld [vmem:[#allocation5 + $0x130] sm:$0xff]
    %v101 = vld [vmem:[#allocation5 + $0x138] sm:$0xff]
    %v102 = vld [vmem:[#allocation5 + $0x140] sm:$0xff]
    %v103 = vld [vmem:[#allocation5 + $0x148] sm:$0xff]
    %v104 = vld [vmem:[#allocation5 + $0x150] sm:$0xff]
    %v105 = vld [vmem:[#allocation5 + $0x158] sm:$0xff]
    %v106 = vld [vmem:[#allocation5 + $0x160] sm:$0xff]
    %v107 = vld [vmem:[#allocation5 + $0x168] sm:$0xff]
    %v108 = vld [vmem:[#allocation5 + $0x170] sm:$0xff]
    %v109 = vld [vmem:[#allocation5 + $0x178] sm:$0xff]
    %v110 = vld [vmem:[#allocation5 + $0x180] sm:$0xff]
    %v111 = vld [vmem:[#allocation5 + $0x188] sm:$0xff]
    %v112 = vld [vmem:[#allocation5 + $0x190] sm:$0xff]
    %v113 = vld [vmem:[#allocation5 + $0x198] sm:$0xff]
    %v114 = vld [vmem:[#allocation5 + $0x1a0] sm:$0xff]
    %v115 = vld [vmem:[#allocation5 + $0x1a8] sm:$0xff]
    %v116 = vld [vmem:[#allocation5 + $0x1b0] sm:$0xff]
    %v117 = vld [vmem:[#allocation5 + $0x1b8] sm:$0xff]
    %v118 = vld [vmem:[#allocation5 + $0x1c0] sm:$0xff]
    %v119 = vld [vmem:[#allocation5 + $0x1c8] sm:$0xff]
    %v120 = vld [vmem:[#allocation5 + $0x1d0] sm:$0xff]
    %v121 = vld [vmem:[#allocation5 + $0x1d8] sm:$0xff]
    %v122 = vld [vmem:[#allocation5 + $0x1e0] sm:$0xff]
    %v123 = vld [vmem:[#allocation5 + $0x1e8] sm:$0xff]
    %v124 = vld [vmem:[#allocation5 + $0x1f0] sm:$0xff]
    %v125 = vld [vmem:[#allocation5 + $0x1f8] sm:$0xff]
    %v126 = vld [vmem:[#allocation5 + $0x200] sm:$0xff]
    %v127 = vld [vmem:[#allocation5 + $0x208] sm:$0xff]
    %v128 = vld [vmem:[#allocation5 + $0x210] sm:$0xff]
    %v129 = vld [vmem:[#allocation5 + $0x218] sm:$0xff]
    %v130 = vld [vmem:[#allocation5 + $0x220] sm:$0xff]
    %v131 = vld [vmem:[#allocation5 + $0x228] sm:$0xff]
    %v132 = vld [vmem:[#allocation5 + $0x230] sm:$0xff]
    %v133 = vld [vmem:[#allocation5 + $0x238] sm:$0xff]
    %v134 = vld [vmem:[#allocation5 + $0x240] sm:$0xff]
    %v135 = vld [vmem:[#allocation5 + $0x248] sm:$0xff]
    %v136 = vld [vmem:[#allocation5 + $0x250] sm:$0xff]
    %v137 = vld [vmem:[#allocation5 + $0x258] sm:$0xff]
    %v138 = vld [vmem:[#allocation5 + $0x260] sm:$0xff]
    %v139 = vld [vmem:[#allocation5 + $0x268] sm:$0xff]
    %v140 = vld [vmem:[#allocation5 + $0x270] sm:$0xff]
    %v141 = vld [vmem:[#allocation5 + $0x278] sm:$0xff]
    %v142 = vld [vmem:[#allocation5 + $0x280] sm:$0xff]
    %v143 = vld [vmem:[#allocation5 + $0x288] sm:$0xff]
    %v144 = vld [vmem:[#allocation5 + $0x290] sm:$0xff]
    %v145 = vld [vmem:[#allocation5 + $0x298] sm:$0xff]
    %v146 = vld [vmem:[#allocation5 + $0x2a0] sm:$0xff]
    %v147 = vld [vmem:[#allocation5 + $0x2a8] sm:$0xff]
    %v148 = vld [vmem:[#allocation5 + $0x2b0] sm:$0xff]
    %v149 = vld [vmem:[#allocation5 + $0x2b8] sm:$0xff]
    %v150 = vld [vmem:[#allocation5 + $0x2c0] sm:$0xff]
    %v151 = vld [vmem:[#allocation5 + $0x2c8] sm:$0xff]
    %v152 = vld [vmem:[#allocation5 + $0x2d0] sm:$0xff]
    %v153 = vld [vmem:[#allocation5 + $0x2d8] sm:$0xff]
    %v154 = vld [vmem:[#allocation5 + $0x2e0] sm:$0xff]
    %v155 = vld [vmem:[#allocation5 + $0x2e8] sm:$0xff]
    %v156 = vld [vmem:[#allocation5 + $0x2f0] sm:$0xff]
    %v157 = vld [vmem:[#allocation5 + $0x2f8] sm:$0xff]
    %v158 = vld [vmem:[#allocation5 + $0x300] sm:$0xff]
    %v159 = vld [vmem:[#allocation5 + $0x308] sm:$0xff]
    %v160 = vld [vmem:[#allocation5 + $0x310] sm:$0xff]
    %v161 = vld [vmem:[#allocation5 + $0x318] sm:$0xff]
    %v162 = vld [vmem:[#allocation5 + $0x320] sm:$0xff]
    %v163 = vld [vmem:[#allocation5 + $0x328] sm:$0xff]
    %v164 = vld [vmem:[#allocation5 + $0x330] sm:$0xff]
    %v165 = vld [vmem:[#allocation5 + $0x338] sm:$0xff]
    %v166 = vld [vmem:[#allocation5 + $0x340] sm:$0xff]
    %v167 = vld [vmem:[#allocation5 + $0x348] sm:$0xff]
    %v168 = vld [vmem:[#allocation5 + $0x350] sm:$0xff]
    %v169 = vld [vmem:[#allocation5 + $0x358] sm:$0xff]
    %v170 = vld [vmem:[#allocation5 + $0x360] sm:$0xff]
    %v171 = vld [vmem:[#allocation5 + $0x368] sm:$0xff]
    %v172 = vld [vmem:[#allocation5 + $0x370] sm:$0xff]
    %v173 = vld [vmem:[#allocation5 + $0x378] sm:$0xff]
    %v174 = vld [vmem:[#allocation5 + $0x380] sm:$0xff]
    %v175 = vld [vmem:[#allocation5 + $0x388] sm:$0xff]
    %v176 = vld [vmem:[#allocation5 + $0x390] sm:$0xff]
    %v177 = vld [vmem:[#allocation5 + $0x398] sm:$0xff]
    %v178 = vld [vmem:[#allocation5 + $0x3a0] sm:$0xff]
    %v179 = vld [vmem:[#allocation5 + $0x3a8] sm:$0xff]
    %v180 = vld [vmem:[#allocation5 + $0x3b0] sm:$0xff]
    %v181 = vld [vmem:[#allocation5 + $0x3b8] sm:$0xff]
    %v182 = vld [vmem:[#allocation5 + $0x3c0] sm:$0xff]
    %v183 = vld [vmem:[#allocation5 + $0x3c8] sm:$0xff]
    %v184 = vld [vmem:[#allocation5 + $0x3d0] sm:$0xff]
    %v185 = vld [vmem:[#allocation5 + $0x3d8] sm:$0xff]
    %v186 = vld [vmem:[#allocation5 + $0x3e0] sm:$0xff]
    %v187 = vld [vmem:[#allocation5 + $0x3e8] sm:$0xff]
    %v188 = vld [vmem:[#allocation5 + $0x3f0] sm:$0xff]
    %v189 = vld [vmem:[#allocation5 + $0x3f8] sm:$0xff]
    %v190 = vld [vmem:[#allocation5 + $0x400] sm:$0xff]
    %v191 = vld [vmem:[#allocation5 + $0x408] sm:$0xff]
    %v192 = vld [vmem:[#allocation5 + $0x410] sm:$0xff]
    %v193 = vld [vmem:[#allocation5 + $0x418] sm:$0xff]
    %v194 = vld [vmem:[#allocation5 + $0x420] sm:$0xff]
    %v195 = vld [vmem:[#allocation5 + $0x428] sm:$0xff]
    %v196 = vld [vmem:[#allocation5 + $0x430] sm:$0xff]
    %v197 = vld [vmem:[#allocation5 + $0x438] sm:$0xff]
    %v198 = vld [vmem:[#allocation5 + $0x440] sm:$0xff]
    %v199 = vld [vmem:[#allocation5 + $0x448] sm:$0xff]
    %v200 = vld [vmem:[#allocation5 + $0x450] sm:$0xff]
    %v201 = vld [vmem:[#allocation5 + $0x458] sm:$0xff]
    %v202 = vld [vmem:[#allocation5 + $0x460] sm:$0xff]
    %v203 = vld [vmem:[#allocation5 + $0x468] sm:$0xff]
    %v204 = vld [vmem:[#allocation5 + $0x470] sm:$0xff]
    %v205 = vld [vmem:[#allocation5 + $0x478] sm:$0xff]
    %v206 = vld [vmem:[#allocation5 + $0x480] sm:$0xff]
    %v207 = vld [vmem:[#allocation5 + $0x488] sm:$0xff]
    %v208 = vld [vmem:[#allocation5 + $0x490] sm:$0xff]
    %v209 = vld [vmem:[#allocation5 + $0x498] sm:$0xff]
    %v210 = vld [vmem:[#allocation5 + $0x4a0] sm:$0xff]
    %v211 = vld [vmem:[#allocation5 + $0x4a8] sm:$0xff]
    %v212 = vld [vmem:[#allocation5 + $0x4b0] sm:$0xff]
    %v213 = vld [vmem:[#allocation5 + $0x4b8] sm:$0xff]
    %v214 = vld [vmem:[#allocation5 + $0x4c0] sm:$0xff]
    %v215 = vld [vmem:[#allocation5 + $0x4c8] sm:$0xff]
    %v216 = vld [vmem:[#allocation5 + $0x4d0] sm:$0xff]
    %v217 = vld [vmem:[#allocation5 + $0x4d8] sm:$0xff]
    %v218 = vld [vmem:[#allocation5 + $0x4e0] sm:$0xff]
    %v219 = vld [vmem:[#allocation5 + $0x4e8] sm:$0xff]
    %v220 = vld [vmem:[#allocation5 + $0x4f0] sm:$0xff]
    %v221 = vld [vmem:[#allocation5 + $0x4f8] sm:$0xff]
    %v222 = vld [vmem:[#allocation5 + $0x500] sm:$0xff]
    %v223 = vld [vmem:[#allocation5 + $0x508] sm:$0xff]
    %v224 = vld [vmem:[#allocation5 + $0x510] sm:$0xff]
    %v225 = vld [vmem:[#allocation5 + $0x518] sm:$0xff]
    %v226 = vld [vmem:[#allocation5 + $0x520] sm:$0xff]
    %v227 = vld [vmem:[#allocation5 + $0x528] sm:$0xff]
    %v228 = vld [vmem:[#allocation5 + $0x530] sm:$0xff]
    %v229 = vld [vmem:[#allocation5 + $0x538] sm:$0xff]
    %v230 = vld [vmem:[#allocation5 + $0x540] sm:$0xff]
    %v231 = vld [vmem:[#allocation5 + $0x548] sm:$0xff]
    %v232 = vld [vmem:[#allocation5 + $0x550] sm:$0xff]
    %v233 = vld [vmem:[#allocation5 + $0x558] sm:$0xff]
    %v234 = vld [vmem:[#allocation5 + $0x560] sm:$0xff]
    %v235 = vld [vmem:[#allocation5 + $0x568] sm:$0xff]
    %v236 = vld [vmem:[#allocation5 + $0x570] sm:$0xff]
    %v237 = vld [vmem:[#allocation5 + $0x578] sm:$0xff]
    %v238 = vld [vmem:[#allocation5 + $0x580] sm:$0xff]
    %v239 = vld [vmem:[#allocation5 + $0x588] sm:$0xff]
    %v240 = vld [vmem:[#allocation5 + $0x590] sm:$0xff]
    %v241 = vld [vmem:[#allocation5 + $0x598] sm:$0xff]
    %v242 = vld [vmem:[#allocation5 + $0x5a0] sm:$0xff]
    %v243 = vld [vmem:[#allocation5 + $0x5a8] sm:$0xff]
    %v244 = vld [vmem:[#allocation5 + $0x5b0] sm:$0xff]
    %v245 = vld [vmem:[#allocation5 + $0x5b8] sm:$0xff]
    %v246 = vld [vmem:[#allocation5 + $0x5c0] sm:$0xff]
    %v247 = vld [vmem:[#allocation5 + $0x5c8] sm:$0xff]
    %v248 = vld [vmem:[#allocation5 + $0x5d0] sm:$0xff]
    %v249 = vld [vmem:[#allocation5 + $0x5d8] sm:$0xff]
    %v250 = vld [vmem:[#allocation5 + $0x5e0] sm:$0xff]
    %v251 = vld [vmem:[#allocation5 + $0x5e8] sm:$0xff]
    %v252 = vld [vmem:[#allocation5 + $0x5f0] sm:$0xff]
    %v253 = vld [vmem:[#allocation5 + $0x5f8] sm:$0xff]
    %v254 = vld [vmem:[#allocation5 + $0x600] sm:$0xff]
    %v255 = vld [vmem:[#allocation5 + $0x608] sm:$0xff]
    %v256 = vld [vmem:[#allocation5 + $0x610] sm:$0xff]
    %v257 = vld [vmem:[#allocation5 + $0x618] sm:$0xff]
    %v258 = vld [vmem:[#allocation5 + $0x620] sm:$0xff]
    %v259 = vld [vmem:[#allocation5 + $0x628] sm:$0xff]
    %v260 = vld [vmem:[#allocation5 + $0x630] sm:$0xff]
    %v261 = vld [vmem:[#allocation5 + $0x638] sm:$0xff]
    %v262 = vld [vmem:[#allocation5 + $0x640] sm:$0xff]
    %v263 = vld [vmem:[#allocation5 + $0x648] sm:$0xff]
    %v264 = vld [vmem:[#allocation5 + $0x650] sm:$0xff]
    %v265 = vld [vmem:[#allocation5 + $0x658] sm:$0xff]
    %v266 = vld [vmem:[#allocation5 + $0x660] sm:$0xff]
    %v267 = vld [vmem:[#allocation5 + $0x668] sm:$0xff]
    %v268 = vld [vmem:[#allocation5 + $0x670] sm:$0xff]
    %v269 = vld [vmem:[#allocation5 + $0x678] sm:$0xff]
    %v270 = vld [vmem:[#allocation5 + $0x680] sm:$0xff]
    %v271 = vld [vmem:[#allocation5 + $0x688] sm:$0xff]
    %v272 = vld [vmem:[#allocation5 + $0x690] sm:$0xff]
    %v273 = vld [vmem:[#allocation5 + $0x698] sm:$0xff]
    %v274 = vld [vmem:[#allocation5 + $0x6a0] sm:$0xff]
    %v275 = vld [vmem:[#allocation5 + $0x6a8] sm:$0xff]
    %v276 = vld [vmem:[#allocation5 + $0x6b0] sm:$0xff]
    %v277 = vld [vmem:[#allocation5 + $0x6b8] sm:$0xff]
    %v278 = vld [vmem:[#allocation5 + $0x6c0] sm:$0xff]
    %v279 = vld [vmem:[#allocation5 + $0x6c8] sm:$0xff]
    %v280 = vld [vmem:[#allocation5 + $0x6d0] sm:$0xff]
    %v281 = vld [vmem:[#allocation5 + $0x6d8] sm:$0xff]
    %v282 = vld [vmem:[#allocation5 + $0x6e0] sm:$0xff]
    %v283 = vld [vmem:[#allocation5 + $0x6e8] sm:$0xff]
    %v284 = vld [vmem:[#allocation5 + $0x6f0] sm:$0xff]
    %v285 = vld [vmem:[#allocation5 + $0x6f8] sm:$0xff]
    %v286 = vld [vmem:[#allocation5 + $0x700] sm:$0xff]
    %v287 = vld [vmem:[#allocation5 + $0x708] sm:$0x3f]
    %v288 = vld [vmem:[#allocation5 + $0x710] sm:$0x3f]
    %v289 = vld [vmem:[#allocation5 + $0x718] sm:$0x3f]
    %v290 = vld [vmem:[#allocation5 + $0x720] sm:$0x3f]
    %v291 = vld [vmem:[#allocation5 + $0x728] sm:$0x3f]
    %v292 = vld [vmem:[#allocation5 + $0x730] sm:$0x3f]
    %v293 = vld [vmem:[#allocation5 + $0x738] sm:$0x3f]
    %v294 = vld [vmem:[#allocation5 + $0x740] sm:$0x3f]
    %v295 = vld [vmem:[#allocation5 + $0x748] sm:$0x3f]
    %v296 = vld [vmem:[#allocation5 + $0x750] sm:$0x3f]
    %v297 = vld [vmem:[#allocation5 + $0x758] sm:$0x3f]
    %v298 = vld [vmem:[#allocation5 + $0x760] sm:$0x3f]
    %v299 = vld [vmem:[#allocation5 + $0x768] sm:$0x3f]
    %v300 = vld [vmem:[#allocation5 + $0x770] sm:$0x3f]
    %v301 = vld [vmem:[#allocation5 + $0x778] sm:$0x3f]
    %v302 = vld [vmem:[#allocation5 + $0x780] sm:$0x3f]
    %v303 = vld [vmem:[#allocation5 + $0x788] sm:$0x3f]
    %v304 = vld [vmem:[#allocation5 + $0x790] sm:$0x3f]
    %v305 = vld [vmem:[#allocation5 + $0x798] sm:$0x3f]
    %v306 = vld [vmem:[#allocation5 + $0x7a0] sm:$0x3f]
    %v307 = vld [vmem:[#allocation5 + $0x7a8] sm:$0x3f]
    %v308 = vld [vmem:[#allocation5 + $0x7b0] sm:$0x3f]
    %v309 = vld [vmem:[#allocation5 + $0x7b8] sm:$0x3f]
    %v310 = vld [vmem:[#allocation5 + $0x7c0] sm:$0x3f]
    %v311 = vld [vmem:[#allocation5 + $0x7c8] sm:$0x3f]
    %v312 = vld [vmem:[#allocation7] sm:$0xff]
    %v313 = vld [vmem:[#allocation7 + $0x8] sm:$0xff]
    %v314 = vld [vmem:[#allocation7 + $0x10] sm:$0xff]
    %v315 = vld [vmem:[#allocation7 + $0x18] sm:$0x1]
    %v320 = vperm.slane %v312, 0
    %v321 = vperm.slane %v312, 1
    %v322 = vperm.slane %v312, 2
    %v323 = vperm.slane %v312, 3
    %v324 = vperm.slane %v312, 4
    %v325 = vperm.slane %v312, 5
    %v326 = vperm.slane %v312, 6
    %v327 = vperm.slane %v312, 7
    %v328 = vperm.slane %v313, 0
    %v329 = vperm.slane %v313, 1
    %v330 = vperm.slane %v313, 2
    %v331 = vperm.slane %v313, 3
    %v332 = vperm.slane %v313, 4
    %v333 = vperm.slane %v313, 5
    %v334 = vperm.slane %v313, 6
    %v335 = vperm.slane %v313, 7
    %v336 = vperm.slane %v314, 0
    %v337 = vperm.slane %v314, 1
    %v338 = vperm.slane %v314, 2
    %v339 = vperm.slane %v314, 3
    %v340 = vperm.slane %v314, 4
    %v341 = vperm.slane %v314, 5
    %v342 = vperm.slane %v314, 6
    %v343 = vperm.slane %v314, 7
    %v344 = vperm.slane %v315, 0
    %vm370 = vcmask 637952
    %v372 = vsel %vm370, %v60, 0
    %v375 = vsel %vm370, %v61, 0
    %vm377 = vcmask 1045504
    %v379 = vsel %vm377, %v287, 0
    %v382 = vsel %vm377, %v288, 0
    %v385 = vsel %vm377, %v289, 0
    %v388 = vsel %vm377, %v290, 0
    %v391 = vsel %vm377, %v291, 0
    %v394 = vsel %vm377, %v292, 0
    %v397 = vsel %vm377, %v293, 0
    %v400 = vsel %vm377, %v294, 0
    %v403 = vsel %vm377, %v295, 0
    %v406 = vsel %vm377, %v296, 0
    %v409 = vsel %vm377, %v297, 0
    %v412 = vsel %vm377, %v298, 0
    %v415 = vsel %vm377, %v299, 0
    %v418 = vsel %vm377, %v300, 0
    %v421 = vsel %vm377, %v301, 0
    %v424 = vsel %vm377, %v302, 0
    %v427 = vsel %vm377, %v303, 0
    %v430 = vsel %vm377, %v304, 0
    %v433 = vsel %vm377, %v305, 0
    %v436 = vsel %vm377, %v306, 0
    %v439 = vsel %vm377, %v307, 0
    %v442 = vsel %vm377, %v308, 0
    %v445 = vsel %vm377, %v309, 0
    %v448 = vsel %vm377, %v310, 0
    %v451 = vsel %vm377, %v311, 0
    %453 = vmatpush.msra.mxu0 0.0
    %454 = vmatpush.msra.mxu0 0.0
    %455 = vmatpush.msra.mxu0 0.0
    %456 = vmatpush.msra.mxu0 0.0
    %457 = vmatpush.msra.mxu0 0.0
    %458 = vmatpush.msra.mxu0 0.0
    %459 = vmatpush.msra.mxu0 %v379
    %460 = vmatpush.msra.mxu0 %v262
    %461 = vmatpush.msra.mxu0 %v237
    %462 = vmatpush.msra.mxu0 %v212
    %463 = vmatpush.msra.mxu0 %v187
    %464 = vmatpush.msra.mxu0 %v162
    %465 = vmatpush.msra.mxu0 %v137
    %466 = vmatpush.msra.mxu0 %v112
    %467 = vmatpush.msra.mxu0 %v87
    %468 = vmatpush.msra.mxu0 %v62
    %469 = vmatmul.f32.gmra.mxu0 %v372
    %v470 = vpop.f32.mrf.mxu0
    %v471 = vadd.f32 %v320, %v470
    %472 = vmatmul.f32.gmra.mxu0 %v375
    %v473 = vpop.f32.mrf.mxu0
    %v474 = vadd.f32 %v320, %v473
    %475 = vdwg.mxu0
    %476 = vmatpush.msra.mxu0 0.0
    %477 = vmatpush.msra.mxu0 0.0
    %478 = vmatpush.msra.mxu0 0.0
    %479 = vmatpush.msra.mxu0 0.0
    %480 = vmatpush.msra.mxu0 0.0
    %481 = vmatpush.msra.mxu0 0.0
    %482 = vmatpush.msra.mxu0 %v382
    %483 = vmatpush.msra.mxu0 %v263
    %484 = vmatpush.msra.mxu0 %v238
    %485 = vmatpush.msra.mxu0 %v213
    %486 = vmatpush.msra.mxu0 %v188
    %487 = vmatpush.msra.mxu0 %v163
    %488 = vmatpush.msra.mxu0 %v138
    %489 = vmatpush.msra.mxu0 %v113
    %490 = vmatpush.msra.mxu0 %v88
    %491 = vmatpush.msra.mxu0 %v63
    %492 = vmatmul.f32.gmra.mxu0 %v372
    %v493 = vpop.f32.mrf.mxu0
    %v494 = vadd.f32 %v321, %v493
    %495 = vmatmul.f32.gmra.mxu0 %v375
    %v496 = vpop.f32.mrf.mxu0
    %v497 = vadd.f32 %v321, %v496
    %498 = vdwg.mxu0
    %499 = vmatpush.msra.mxu0 0.0
    %500 = vmatpush.msra.mxu0 0.0
    %501 = vmatpush.msra.mxu0 0.0
    %502 = vmatpush.msra.mxu0 0.0
    %503 = vmatpush.msra.mxu0 0.0
    %504 = vmatpush.msra.mxu0 0.0
    %505 = vmatpush.msra.mxu0 %v385
    %506 = vmatpush.msra.mxu0 %v264
    %507 = vmatpush.msra.mxu0 %v239
    %508 = vmatpush.msra.mxu0 %v214
    %509 = vmatpush.msra.mxu0 %v189
    %510 = vmatpush.msra.mxu0 %v164
    %511 = vmatpush.msra.mxu0 %v139
    %512 = vmatpush.msra.mxu0 %v114
    %513 = vmatpush.msra.mxu0 %v89
    %514 = vmatpush.msra.mxu0 %v64
    %515 = vmatmul.f32.gmra.mxu0 %v372
    %v516 = vpop.f32.mrf.mxu0
    %v517 = vadd.f32 %v322, %v516
    %518 = vmatmul.f32.gmra.mxu0 %v375
    %v519 = vpop.f32.mrf.mxu0
    %v520 = vadd.f32 %v322, %v519
    %521 = vdwg.mxu0
    %522 = vmatpush.msra.mxu0 0.0
    %523 = vmatpush.msra.mxu0 0.0
    %524 = vmatpush.msra.mxu0 0.0
    %525 = vmatpush.msra.mxu0 0.0
    %526 = vmatpush.msra.mxu0 0.0
    %527 = vmatpush.msra.mxu0 0.0
    %528 = vmatpush.msra.mxu0 %v388
    %529 = vmatpush.msra.mxu0 %v265
    %530 = vmatpush.msra.mxu0 %v240
    %531 = vmatpush.msra.mxu0 %v215
    %532 = vmatpush.msra.mxu0 %v190
    %533 = vmatpush.msra.mxu0 %v165
    %534 = vmatpush.msra.mxu0 %v140
    %535 = vmatpush.msra.mxu0 %v115
    %536 = vmatpush.msra.mxu0 %v90
    %537 = vmatpush.msra.mxu0 %v65
    %538 = vmatmul.f32.gmra.mxu0 %v372
    %v539 = vpop.f32.mrf.mxu0
    %v540 = vadd.f32 %v323, %v539
    %541 = vmatmul.f32.gmra.mxu0 %v375
    %v542 = vpop.f32.mrf.mxu0
    %v543 = vadd.f32 %v323, %v542
    %544 = vdwg.mxu0
    %545 = vmatpush.msra.mxu0 0.0
    %546 = vmatpush.msra.mxu0 0.0
    %547 = vmatpush.msra.mxu0 0.0
    %548 = vmatpush.msra.mxu0 0.0
    %549 = vmatpush.msra.mxu0 0.0
    %550 = vmatpush.msra.mxu0 0.0
    %551 = vmatpush.msra.mxu0 %v391
    %552 = vmatpush.msra.mxu0 %v266
    %553 = vmatpush.msra.mxu0 %v241
    %554 = vmatpush.msra.mxu0 %v216
    %555 = vmatpush.msra.mxu0 %v191
    %556 = vmatpush.msra.mxu0 %v166
    %557 = vmatpush.msra.mxu0 %v141
    %558 = vmatpush.msra.mxu0 %v116
    %559 = vmatpush.msra.mxu0 %v91
    %560 = vmatpush.msra.mxu0 %v66
    %561 = vmatmul.f32.gmra.mxu0 %v372
    %v562 = vpop.f32.mrf.mxu0
    %v563 = vadd.f32 %v324, %v562
    %564 = vmatmul.f32.gmra.mxu0 %v375
    %v565 = vpop.f32.mrf.mxu0
    %v566 = vadd.f32 %v324, %v565
    %567 = vdwg.mxu0
    %568 = vmatpush.msra.mxu0 0.0
    %569 = vmatpush.msra.mxu0 0.0
    %570 = vmatpush.msra.mxu0 0.0
    %571 = vmatpush.msra.mxu0 0.0
    %572 = vmatpush.msra.mxu0 0.0
    %573 = vmatpush.msra.mxu0 0.0
    %574 = vmatpush.msra.mxu0 %v394
    %575 = vmatpush.msra.mxu0 %v267
    %576 = vmatpush.msra.mxu0 %v242
    %577 = vmatpush.msra.mxu0 %v217
    %578 = vmatpush.msra.mxu0 %v192
    %579 = vmatpush.msra.mxu0 %v167
    %580 = vmatpush.msra.mxu0 %v142
    %581 = vmatpush.msra.mxu0 %v117
    %582 = vmatpush.msra.mxu0 %v92
    %583 = vmatpush.msra.mxu0 %v67
    %584 = vmatmul.f32.gmra.mxu0 %v372
    %v585 = vpop.f32.mrf.mxu0
    %v586 = vadd.f32 %v325, %v585
    %587 = vmatmul.f32.gmra.mxu0 %v375
    %v588 = vpop.f32.mrf.mxu0
    %v589 = vadd.f32 %v325, %v588
    %590 = vdwg.mxu0
    %591 = vmatpush.msra.mxu0 0.0
    %592 = vmatpush.msra.mxu0 0.0
    %593 = vmatpush.msra.mxu0 0.0
    %594 = vmatpush.msra.mxu0 0.0
    %595 = vmatpush.msra.mxu0 0.0
    %596 = vmatpush.msra.mxu0 0.0
    %597 = vmatpush.msra.mxu0 %v397
    %598 = vmatpush.msra.mxu0 %v268
    %599 = vmatpush.msra.mxu0 %v243
    %600 = vmatpush.msra.mxu0 %v218
    %601 = vmatpush.msra.mxu0 %v193
    %602 = vmatpush.msra.mxu0 %v168
    %603 = vmatpush.msra.mxu0 %v143
    %604 = vmatpush.msra.mxu0 %v118
    %605 = vmatpush.msra.mxu0 %v93
    %606 = vmatpush.msra.mxu0 %v68
    %607 = vmatmul.f32.gmra.mxu0 %v372
    %v608 = vpop.f32.mrf.mxu0
    %v609 = vadd.f32 %v326, %v608
    %610 = vmatmul.f32.gmra.mxu0 %v375
    %v611 = vpop.f32.mrf.mxu0
    %v612 = vadd.f32 %v326, %v611
    %613 = vdwg.mxu0
    %614 = vmatpush.msra.mxu0 0.0
    %615 = vmatpush.msra.mxu0 0.0
    %616 = vmatpush.msra.mxu0 0.0
    %617 = vmatpush.msra.mxu0 0.0
    %618 = vmatpush.msra.mxu0 0.0
    %619 = vmatpush.msra.mxu0 0.0
    %620 = vmatpush.msra.mxu0 %v400
    %621 = vmatpush.msra.mxu0 %v269
    %622 = vmatpush.msra.mxu0 %v244
    %623 = vmatpush.msra.mxu0 %v219
    %624 = vmatpush.msra.mxu0 %v194
    %625 = vmatpush.msra.mxu0 %v169
    %626 = vmatpush.msra.mxu0 %v144
    %627 = vmatpush.msra.mxu0 %v119
    %628 = vmatpush.msra.mxu0 %v94
    %629 = vmatpush.msra.mxu0 %v69
    %630 = vmatmul.f32.gmra.mxu0 %v372
    %v631 = vpop.f32.mrf.mxu0
    %v632 = vadd.f32 %v327, %v631
    %633 = vmatmul.f32.gmra.mxu0 %v375
    %v634 = vpop.f32.mrf.mxu0
    %v635 = vadd.f32 %v327, %v634
    %636 = vdwg.mxu0
    %637 = vmatpush.msra.mxu0 0.0
    %638 = vmatpush.msra.mxu0 0.0
    %639 = vmatpush.msra.mxu0 0.0
    %640 = vmatpush.msra.mxu0 0.0
    %641 = vmatpush.msra.mxu0 0.0
    %642 = vmatpush.msra.mxu0 0.0
    %643 = vmatpush.msra.mxu0 %v403
    %644 = vmatpush.msra.mxu0 %v270
    %645 = vmatpush.msra.mxu0 %v245
    %646 = vmatpush.msra.mxu0 %v220
    %647 = vmatpush.msra.mxu0 %v195
    %648 = vmatpush.msra.mxu0 %v170
    %649 = vmatpush.msra.mxu0 %v145
    %650 = vmatpush.msra.mxu0 %v120
    %651 = vmatpush.msra.mxu0 %v95
    %652 = vmatpush.msra.mxu0 %v70
    %653 = vmatmul.f32.gmra.mxu0 %v372
    %v654 = vpop.f32.mrf.mxu0
    %v655 = vadd.f32 %v328, %v654
    %656 = vmatmul.f32.gmra.mxu0 %v375
    %v657 = vpop.f32.mrf.mxu0
    %v658 = vadd.f32 %v328, %v657
    %659 = vdwg.mxu0
    %660 = vmatpush.msra.mxu0 0.0
    %661 = vmatpush.msra.mxu0 0.0
    %662 = vmatpush.msra.mxu0 0.0
    %663 = vmatpush.msra.mxu0 0.0
    %664 = vmatpush.msra.mxu0 0.0
    %665 = vmatpush.msra.mxu0 0.0
    %666 = vmatpush.msra.mxu0 %v406
    %667 = vmatpush.msra.mxu0 %v271
    %668 = vmatpush.msra.mxu0 %v246
    %669 = vmatpush.msra.mxu0 %v221
    %670 = vmatpush.msra.mxu0 %v196
    %671 = vmatpush.msra.mxu0 %v171
    %672 = vmatpush.msra.mxu0 %v146
    %673 = vmatpush.msra.mxu0 %v121
    %674 = vmatpush.msra.mxu0 %v96
    %675 = vmatpush.msra.mxu0 %v71
    %676 = vmatmul.f32.gmra.mxu0 %v372
    %v677 = vpop.f32.mrf.mxu0
    %v678 = vadd.f32 %v329, %v677
    %679 = vmatmul.f32.gmra.mxu0 %v375
    %v680 = vpop.f32.mrf.mxu0
    %v681 = vadd.f32 %v329, %v680
    %682 = vdwg.mxu0
    %683 = vmatpush.msra.mxu0 0.0
    %684 = vmatpush.msra.mxu0 0.0
    %685 = vmatpush.msra.mxu0 0.0
    %686 = vmatpush.msra.mxu0 0.0
    %687 = vmatpush.msra.mxu0 0.0
    %688 = vmatpush.msra.mxu0 0.0
    %689 = vmatpush.msra.mxu0 %v409
    %690 = vmatpush.msra.mxu0 %v272
    %691 = vmatpush.msra.mxu0 %v247
    %692 = vmatpush.msra.mxu0 %v222
    %693 = vmatpush.msra.mxu0 %v197
    %694 = vmatpush.msra.mxu0 %v172
    %695 = vmatpush.msra.mxu0 %v147
    %696 = vmatpush.msra.mxu0 %v122
    %697 = vmatpush.msra.mxu0 %v97
    %698 = vmatpush.msra.mxu0 %v72
    %699 = vmatmul.f32.gmra.mxu0 %v372
    %v700 = vpop.f32.mrf.mxu0
    %v701 = vadd.f32 %v330, %v700
    %702 = vmatmul.f32.gmra.mxu0 %v375
    %v703 = vpop.f32.mrf.mxu0
    %v704 = vadd.f32 %v330, %v703
    %705 = vdwg.mxu0
    %706 = vmatpush.msra.mxu0 0.0
    %707 = vmatpush.msra.mxu0 0.0
    %708 = vmatpush.msra.mxu0 0.0
    %709 = vmatpush.msra.mxu0 0.0
    %710 = vmatpush.msra.mxu0 0.0
    %711 = vmatpush.msra.mxu0 0.0
    %712 = vmatpush.msra.mxu0 %v412
    %713 = vmatpush.msra.mxu0 %v273
    %714 = vmatpush.msra.mxu0 %v248
    %715 = vmatpush.msra.mxu0 %v223
    %716 = vmatpush.msra.mxu0 %v198
    %717 = vmatpush.msra.mxu0 %v173
    %718 = vmatpush.msra.mxu0 %v148
    %719 = vmatpush.msra.mxu0 %v123
    %720 = vmatpush.msra.mxu0 %v98
    %721 = vmatpush.msra.mxu0 %v73
    %722 = vmatmul.f32.gmra.mxu0 %v372
    %v723 = vpop.f32.mrf.mxu0
    %v724 = vadd.f32 %v331, %v723
    %725 = vmatmul.f32.gmra.mxu0 %v375
    %v726 = vpop.f32.mrf.mxu0
    %v727 = vadd.f32 %v331, %v726
    %728 = vdwg.mxu0
    %729 = vmatpush.msra.mxu0 0.0
    %730 = vmatpush.msra.mxu0 0.0
    %731 = vmatpush.msra.mxu0 0.0
    %732 = vmatpush.msra.mxu0 0.0
    %733 = vmatpush.msra.mxu0 0.0
    %734 = vmatpush.msra.mxu0 0.0
    %735 = vmatpush.msra.mxu0 %v415
    %736 = vmatpush.msra.mxu0 %v274
    %737 = vmatpush.msra.mxu0 %v249
    %738 = vmatpush.msra.mxu0 %v224
    %739 = vmatpush.msra.mxu0 %v199
    %740 = vmatpush.msra.mxu0 %v174
    %741 = vmatpush.msra.mxu0 %v149
    %742 = vmatpush.msra.mxu0 %v124
    %743 = vmatpush.msra.mxu0 %v99
    %744 = vmatpush.msra.mxu0 %v74
    %745 = vmatmul.f32.gmra.mxu0 %v372
    %v746 = vpop.f32.mrf.mxu0
    %v747 = vadd.f32 %v332, %v746
    %748 = vmatmul.f32.gmra.mxu0 %v375
    %v749 = vpop.f32.mrf.mxu0
    %v750 = vadd.f32 %v332, %v749
    %751 = vdwg.mxu0
    %752 = vmatpush.msra.mxu0 0.0
    %753 = vmatpush.msra.mxu0 0.0
    %754 = vmatpush.msra.mxu0 0.0
    %755 = vmatpush.msra.mxu0 0.0
    %756 = vmatpush.msra.mxu0 0.0
    %757 = vmatpush.msra.mxu0 0.0
    %758 = vmatpush.msra.mxu0 %v418
    %759 = vmatpush.msra.mxu0 %v275
    %760 = vmatpush.msra.mxu0 %v250
    %761 = vmatpush.msra.mxu0 %v225
    %762 = vmatpush.msra.mxu0 %v200
    %763 = vmatpush.msra.mxu0 %v175
    %764 = vmatpush.msra.mxu0 %v150
    %765 = vmatpush.msra.mxu0 %v125
    %766 = vmatpush.msra.mxu0 %v100
    %767 = vmatpush.msra.mxu0 %v75
    %768 = vmatmul.f32.gmra.mxu0 %v372
    %v769 = vpop.f32.mrf.mxu0
    %v770 = vadd.f32 %v333, %v769
    %771 = vmatmul.f32.gmra.mxu0 %v375
    %v772 = vpop.f32.mrf.mxu0
    %v773 = vadd.f32 %v333, %v772
    %774 = vdwg.mxu0
    %775 = vmatpush.msra.mxu0 0.0
    %776 = vmatpush.msra.mxu0 0.0
    %777 = vmatpush.msra.mxu0 0.0
    %778 = vmatpush.msra.mxu0 0.0
    %779 = vmatpush.msra.mxu0 0.0
    %780 = vmatpush.msra.mxu0 0.0
    %781 = vmatpush.msra.mxu0 %v421
    %782 = vmatpush.msra.mxu0 %v276
    %783 = vmatpush.msra.mxu0 %v251
    %784 = vmatpush.msra.mxu0 %v226
    %785 = vmatpush.msra.mxu0 %v201
    %786 = vmatpush.msra.mxu0 %v176
    %787 = vmatpush.msra.mxu0 %v151
    %788 = vmatpush.msra.mxu0 %v126
    %789 = vmatpush.msra.mxu0 %v101
    %790 = vmatpush.msra.mxu0 %v76
    %791 = vmatmul.f32.gmra.mxu0 %v372
    %v792 = vpop.f32.mrf.mxu0
    %v793 = vadd.f32 %v334, %v792
    %794 = vmatmul.f32.gmra.mxu0 %v375
    %v795 = vpop.f32.mrf.mxu0
    %v796 = vadd.f32 %v334, %v795
    %797 = vdwg.mxu0
    %798 = vmatpush.msra.mxu0 0.0
    %799 = vmatpush.msra.mxu0 0.0
    %800 = vmatpush.msra.mxu0 0.0
    %801 = vmatpush.msra.mxu0 0.0
    %802 = vmatpush.msra.mxu0 0.0
    %803 = vmatpush.msra.mxu0 0.0
    %804 = vmatpush.msra.mxu0 %v424
    %805 = vmatpush.msra.mxu0 %v277
    %806 = vmatpush.msra.mxu0 %v252
    %807 = vmatpush.msra.mxu0 %v227
    %808 = vmatpush.msra.mxu0 %v202
    %809 = vmatpush.msra.mxu0 %v177
    %810 = vmatpush.msra.mxu0 %v152
    %811 = vmatpush.msra.mxu0 %v127
    %812 = vmatpush.msra.mxu0 %v102
    %813 = vmatpush.msra.mxu0 %v77
    %814 = vmatmul.f32.gmra.mxu0 %v372
    %v815 = vpop.f32.mrf.mxu0
    %v816 = vadd.f32 %v335, %v815
    %817 = vmatmul.f32.gmra.mxu0 %v375
    %v818 = vpop.f32.mrf.mxu0
    %v819 = vadd.f32 %v335, %v818
    %820 = vdwg.mxu0
    %821 = vmatpush.msra.mxu0 0.0
    %822 = vmatpush.msra.mxu0 0.0
    %823 = vmatpush.msra.mxu0 0.0
    %824 = vmatpush.msra.mxu0 0.0
    %825 = vmatpush.msra.mxu0 0.0
    %826 = vmatpush.msra.mxu0 0.0
    %827 = vmatpush.msra.mxu0 %v427
    %828 = vmatpush.msra.mxu0 %v278
    %829 = vmatpush.msra.mxu0 %v253
    %830 = vmatpush.msra.mxu0 %v228
    %831 = vmatpush.msra.mxu0 %v203
    %832 = vmatpush.msra.mxu0 %v178
    %833 = vmatpush.msra.mxu0 %v153
    %834 = vmatpush.msra.mxu0 %v128
    %835 = vmatpush.msra.mxu0 %v103
    %836 = vmatpush.msra.mxu0 %v78
    %837 = vmatmul.f32.gmra.mxu0 %v372
    %v838 = vpop.f32.mrf.mxu0
    %v839 = vadd.f32 %v336, %v838
    %840 = vmatmul.f32.gmra.mxu0 %v375
    %v841 = vpop.f32.mrf.mxu0
    %v842 = vadd.f32 %v336, %v841
    %843 = vdwg.mxu0
    %844 = vmatpush.msra.mxu0 0.0
    %845 = vmatpush.msra.mxu0 0.0
    %846 = vmatpush.msra.mxu0 0.0
    %847 = vmatpush.msra.mxu0 0.0
    %848 = vmatpush.msra.mxu0 0.0
    %849 = vmatpush.msra.mxu0 0.0
    %850 = vmatpush.msra.mxu0 %v430
    %851 = vmatpush.msra.mxu0 %v279
    %852 = vmatpush.msra.mxu0 %v254
    %853 = vmatpush.msra.mxu0 %v229
    %854 = vmatpush.msra.mxu0 %v204
    %855 = vmatpush.msra.mxu0 %v179
    %856 = vmatpush.msra.mxu0 %v154
    %857 = vmatpush.msra.mxu0 %v129
    %858 = vmatpush.msra.mxu0 %v104
    %859 = vmatpush.msra.mxu0 %v79
    %860 = vmatmul.f32.gmra.mxu0 %v372
    %v861 = vpop.f32.mrf.mxu0
    %v862 = vadd.f32 %v337, %v861
    %863 = vmatmul.f32.gmra.mxu0 %v375
    %v864 = vpop.f32.mrf.mxu0
    %v865 = vadd.f32 %v337, %v864
    %866 = vdwg.mxu0
    %867 = vmatpush.msra.mxu0 0.0
    %868 = vmatpush.msra.mxu0 0.0
    %869 = vmatpush.msra.mxu0 0.0
    %870 = vmatpush.msra.mxu0 0.0
    %871 = vmatpush.msra.mxu0 0.0
    %872 = vmatpush.msra.mxu0 0.0
    %873 = vmatpush.msra.mxu0 %v433
    %874 = vmatpush.msra.mxu0 %v280
    %875 = vmatpush.msra.mxu0 %v255
    %876 = vmatpush.msra.mxu0 %v230
    %877 = vmatpush.msra.mxu0 %v205
    %878 = vmatpush.msra.mxu0 %v180
    %879 = vmatpush.msra.mxu0 %v155
    %880 = vmatpush.msra.mxu0 %v130
    %881 = vmatpush.msra.mxu0 %v105
    %882 = vmatpush.msra.mxu0 %v80
    %883 = vmatmul.f32.gmra.mxu0 %v372
    %v884 = vpop.f32.mrf.mxu0
    %v885 = vadd.f32 %v338, %v884
    %886 = vmatmul.f32.gmra.mxu0 %v375
    %v887 = vpop.f32.mrf.mxu0
    %v888 = vadd.f32 %v338, %v887
    %889 = vdwg.mxu0
    %890 = vmatpush.msra.mxu0 0.0
    %891 = vmatpush.msra.mxu0 0.0
    %892 = vmatpush.msra.mxu0 0.0
    %893 = vmatpush.msra.mxu0 0.0
    %894 = vmatpush.msra.mxu0 0.0
    %895 = vmatpush.msra.mxu0 0.0
    %896 = vmatpush.msra.mxu0 %v436
    %897 = vmatpush.msra.mxu0 %v281
    %898 = vmatpush.msra.mxu0 %v256
    %899 = vmatpush.msra.mxu0 %v231
    %900 = vmatpush.msra.mxu0 %v206
    %901 = vmatpush.msra.mxu0 %v181
    %902 = vmatpush.msra.mxu0 %v156
    %903 = vmatpush.msra.mxu0 %v131
    %904 = vmatpush.msra.mxu0 %v106
    %905 = vmatpush.msra.mxu0 %v81
    %906 = vmatmul.f32.gmra.mxu0 %v372
    %v907 = vpop.f32.mrf.mxu0
    %v908 = vadd.f32 %v339, %v907
    %909 = vmatmul.f32.gmra.mxu0 %v375
    %v910 = vpop.f32.mrf.mxu0
    %v911 = vadd.f32 %v339, %v910
    %912 = vdwg.mxu0
    %913 = vmatpush.msra.mxu0 0.0
    %914 = vmatpush.msra.mxu0 0.0
    %915 = vmatpush.msra.mxu0 0.0
    %916 = vmatpush.msra.mxu0 0.0
    %917 = vmatpush.msra.mxu0 0.0
    %918 = vmatpush.msra.mxu0 0.0
    %919 = vmatpush.msra.mxu0 %v439
    %920 = vmatpush.msra.mxu0 %v282
    %921 = vmatpush.msra.mxu0 %v257
    %922 = vmatpush.msra.mxu0 %v232
    %923 = vmatpush.msra.mxu0 %v207
    %924 = vmatpush.msra.mxu0 %v182
    %925 = vmatpush.msra.mxu0 %v157
    %926 = vmatpush.msra.mxu0 %v132
    %927 = vmatpush.msra.mxu0 %v107
    %928 = vmatpush.msra.mxu0 %v82
    %929 = vmatmul.f32.gmra.mxu0 %v372
    %v930 = vpop.f32.mrf.mxu0
    %v931 = vadd.f32 %v340, %v930
    %932 = vmatmul.f32.gmra.mxu0 %v375
    %v933 = vpop.f32.mrf.mxu0
    %v934 = vadd.f32 %v340, %v933
    %935 = vdwg.mxu0
    %936 = vmatpush.msra.mxu0 0.0
    %937 = vmatpush.msra.mxu0 0.0
    %938 = vmatpush.msra.mxu0 0.0
    %939 = vmatpush.msra.mxu0 0.0
    %940 = vmatpush.msra.mxu0 0.0
    %941 = vmatpush.msra.mxu0 0.0
    %942 = vmatpush.msra.mxu0 %v442
    %943 = vmatpush.msra.mxu0 %v283
    %944 = vmatpush.msra.mxu0 %v258
    %945 = vmatpush.msra.mxu0 %v233
    %946 = vmatpush.msra.mxu0 %v208
    %947 = vmatpush.msra.mxu0 %v183
    %948 = vmatpush.msra.mxu0 %v158
    %949 = vmatpush.msra.mxu0 %v133
    %950 = vmatpush.msra.mxu0 %v108
    %951 = vmatpush.msra.mxu0 %v83
    %952 = vmatmul.f32.gmra.mxu0 %v372
    %v953 = vpop.f32.mrf.mxu0
    %v954 = vadd.f32 %v341, %v953
    %955 = vmatmul.f32.gmra.mxu0 %v375
    %v956 = vpop.f32.mrf.mxu0
    %v957 = vadd.f32 %v341, %v956
    %958 = vdwg.mxu0
    %959 = vmatpush.msra.mxu0 0.0
    %960 = vmatpush.msra.mxu0 0.0
    %961 = vmatpush.msra.mxu0 0.0
    %962 = vmatpush.msra.mxu0 0.0
    %963 = vmatpush.msra.mxu0 0.0
    %964 = vmatpush.msra.mxu0 0.0
    %965 = vmatpush.msra.mxu0 %v445
    %966 = vmatpush.msra.mxu0 %v284
    %967 = vmatpush.msra.mxu0 %v259
    %968 = vmatpush.msra.mxu0 %v234
    %969 = vmatpush.msra.mxu0 %v209
    %970 = vmatpush.msra.mxu0 %v184
    %971 = vmatpush.msra.mxu0 %v159
    %972 = vmatpush.msra.mxu0 %v134
    %973 = vmatpush.msra.mxu0 %v109
    %974 = vmatpush.msra.mxu0 %v84
    %975 = vmatmul.f32.gmra.mxu0 %v372
    %v976 = vpop.f32.mrf.mxu0
    %v977 = vadd.f32 %v342, %v976
    %978 = vmatmul.f32.gmra.mxu0 %v375
    %v979 = vpop.f32.mrf.mxu0
    %v980 = vadd.f32 %v342, %v979
    %981 = vdwg.mxu0
    %982 = vmatpush.msra.mxu0 0.0
    %983 = vmatpush.msra.mxu0 0.0
    %984 = vmatpush.msra.mxu0 0.0
    %985 = vmatpush.msra.mxu0 0.0
    %986 = vmatpush.msra.mxu0 0.0
    %987 = vmatpush.msra.mxu0 0.0
    %988 = vmatpush.msra.mxu0 %v448
    %989 = vmatpush.msra.mxu0 %v285
    %990 = vmatpush.msra.mxu0 %v260
    %991 = vmatpush.msra.mxu0 %v235
    %992 = vmatpush.msra.mxu0 %v210
    %993 = vmatpush.msra.mxu0 %v185
    %994 = vmatpush.msra.mxu0 %v160
    %995 = vmatpush.msra.mxu0 %v135
    %996 = vmatpush.msra.mxu0 %v110
    %997 = vmatpush.msra.mxu0 %v85
    %998 = vmatmul.f32.gmra.mxu0 %v372
    %v999 = vpop.f32.mrf.mxu0
    %v1000 = vadd.f32 %v343, %v999
    %1001 = vmatmul.f32.gmra.mxu0 %v375
    %v1002 = vpop.f32.mrf.mxu0
    %v1003 = vadd.f32 %v343, %v1002
    %1004 = vdwg.mxu0
    %1005 = vmatpush.msra.mxu0 0.0
    %1006 = vmatpush.msra.mxu0 0.0
    %1007 = vmatpush.msra.mxu0 0.0
    %1008 = vmatpush.msra.mxu0 0.0
    %1009 = vmatpush.msra.mxu0 0.0
    %1010 = vmatpush.msra.mxu0 0.0
    %1011 = vmatpush.msra.mxu0 %v451
    %1012 = vmatpush.msra.mxu0 %v286
    %1013 = vmatpush.msra.mxu0 %v261
    %1014 = vmatpush.msra.mxu0 %v236
    %1015 = vmatpush.msra.mxu0 %v211
    %1016 = vmatpush.msra.mxu0 %v186
    %1017 = vmatpush.msra.mxu0 %v161
    %1018 = vmatpush.msra.mxu0 %v136
    %1019 = vmatpush.msra.mxu0 %v111
    %1020 = vmatpush.msra.mxu0 %v86
    %1021 = vmatmul.f32.gmra.mxu0 %v372
    %v1022 = vpop.f32.mrf.mxu0
    %v1023 = vadd.f32 %v344, %v1022
    %1024 = vmatmul.f32.gmra.mxu0 %v375
    %v1025 = vpop.f32.mrf.mxu0
    %v1026 = vadd.f32 %v344, %v1025
    %1027 = vdwg.mxu0
    %1028 = vst [vmem:[#allocation8] sm:$0xff] %v471
    %1029 = vst [vmem:[#allocation8 + $0x8] sm:$0xff] %v494
    %1030 = vst [vmem:[#allocation8 + $0x10] sm:$0xff] %v517
    %1031 = vst [vmem:[#allocation8 + $0x18] sm:$0xff] %v540
    %1032 = vst [vmem:[#allocation8 + $0x20] sm:$0xff] %v563
    %1033 = vst [vmem:[#allocation8 + $0x28] sm:$0xff] %v586
    %1034 = vst [vmem:[#allocation8 + $0x30] sm:$0xff] %v609
    %1035 = vst [vmem:[#allocation8 + $0x38] sm:$0xff] %v632
    %1036 = vst [vmem:[#allocation8 + $0x40] sm:$0xff] %v655
    %1037 = vst [vmem:[#allocation8 + $0x48] sm:$0xff] %v678
    %1038 = vst [vmem:[#allocation8 + $0x50] sm:$0xff] %v701
    %1039 = vst [vmem:[#allocation8 + $0x58] sm:$0xff] %v724
    %1040 = vst [vmem:[#allocation8 + $0x60] sm:$0xff] %v747
    %1041 = vst [vmem:[#allocation8 + $0x68] sm:$0xff] %v770
    %1042 = vst [vmem:[#allocation8 + $0x70] sm:$0xff] %v793
    %1043 = vst [vmem:[#allocation8 + $0x78] sm:$0xff] %v816
    %1044 = vst [vmem:[#allocation8 + $0x80] sm:$0xff] %v839
    %1045 = vst [vmem:[#allocation8 + $0x88] sm:$0xff] %v862
    %1046 = vst [vmem:[#allocation8 + $0x90] sm:$0xff] %v885
    %1047 = vst [vmem:[#allocation8 + $0x98] sm:$0xff] %v908
    %1048 = vst [vmem:[#allocation8 + $0xa0] sm:$0xff] %v931
    %1049 = vst [vmem:[#allocation8 + $0xa8] sm:$0xff] %v954
    %1050 = vst [vmem:[#allocation8 + $0xb0] sm:$0xff] %v977
    %1051 = vst [vmem:[#allocation8 + $0xb8] sm:$0xff] %v1000
    %vm1052 = vcmask 392192
    %1053 = vst.msk [vmem:[#allocation8 + $0xc0] sm:$0xff] %vm1052, %v1023
    %1054 = vst [vmem:[#allocation8 + $0xc8] sm:$0xff] %v474
    %1055 = vst [vmem:[#allocation8 + $0xd0] sm:$0xff] %v497
    %1056 = vst [vmem:[#allocation8 + $0xd8] sm:$0xff] %v520
    %1057 = vst [vmem:[#allocation8 + $0xe0] sm:$0xff] %v543
    %1058 = vst [vmem:[#allocation8 + $0xe8] sm:$0xff] %v566
    %1059 = vst [vmem:[#allocation8 + $0xf0] sm:$0xff] %v589
    %1060 = vst [vmem:[#allocation8 + $0xf8] sm:$0xff] %v612
    %1061 = vst [vmem:[#allocation8 + $0x100] sm:$0xff] %v635
    %1062 = vst [vmem:[#allocation8 + $0x108] sm:$0xff] %v658
    %1063 = vst [vmem:[#allocation8 + $0x110] sm:$0xff] %v681
    %1064 = vst [vmem:[#allocation8 + $0x118] sm:$0xff] %v704
    %1065 = vst [vmem:[#allocation8 + $0x120] sm:$0xff] %v727
    %1066 = vst [vmem:[#allocation8 + $0x128] sm:$0xff] %v750
    %1067 = vst [vmem:[#allocation8 + $0x130] sm:$0xff] %v773
    %1068 = vst [vmem:[#allocation8 + $0x138] sm:$0xff] %v796
    %1069 = vst [vmem:[#allocation8 + $0x140] sm:$0xff] %v819
    %1070 = vst [vmem:[#allocation8 + $0x148] sm:$0xff] %v842
    %1071 = vst [vmem:[#allocation8 + $0x150] sm:$0xff] %v865
    %1072 = vst [vmem:[#allocation8 + $0x158] sm:$0xff] %v888
    %1073 = vst [vmem:[#allocation8 + $0x160] sm:$0xff] %v911
    %1074 = vst [vmem:[#allocation8 + $0x168] sm:$0xff] %v934
    %1075 = vst [vmem:[#allocation8 + $0x170] sm:$0xff] %v957
    %1076 = vst [vmem:[#allocation8 + $0x178] sm:$0xff] %v980
    %1077 = vst [vmem:[#allocation8 + $0x180] sm:$0xff] %v1003
    %1078 = vst.msk [vmem:[#allocation8 + $0x188] sm:$0xff] %vm1052, %v1026
    // Predicated region
    $region26: #{tpu_custom_call.1} parent=1 // pred_check
      _
    $region27: #{tpu_custom_call.1} parent=1 // pred_check_branch
      %1080 = sbr.rel (0) target = $region29
    $region28: #{tpu_custom_call.1} parent=1 // pred_region
      %1082 = vsyncadd [#allocation4], 0
      %s1083 = sshll.u32 [#allocation8], 4
      %s1084 = int_to_ptr.vmem [resolvable:$true] %s1083
      %s1085 = sshll.u32 %s3, 4
      %s1086 = int_to_ptr.hbm [resolvable:$true] %s1085
      %1091 = dma.vmem_to_hbm [thread:$0]  %s1084, 6400, %s1086, [#allocation4], 3200, 3200, 200
    $region29: #{tpu_custom_call.1} parent=1 // pred_fallthru
      _
    // Predicated region
    $region30: #{tpu_custom_call.1} parent=1 // pred_check
      _
    $region31: #{tpu_custom_call.1} parent=1 // pred_check_branch
      %1093 = sbr.rel (0) target = $region33
    $region32: #{tpu_custom_call.1} parent=1 // pred_region
      %1095 = dma.done [#allocation4], 6400
    $region33: #{tpu_custom_call.1} parent=1 // pred_fallthru
      _
    %1096 = vsyncpa [#allocation3], 1
    %1097 = vsyncpa [#allocation6], 1
    %1098 = vsyncpa [#allocation4], 1

</llo_original>
